<compile_context>
chip_gen: v6e
topology: v6e:2x2x1
jax: 0.10.0
libtpu: 0.0.40
codegen_flags: <defaults>
</compile_context>

<pallas_src>
import functools
from math import sqrt

import jax
import jax.numpy as jnp
from jax import lax
from jax.experimental import pallas as pl
from jax.experimental.pallas import tpu as pltpu

_INV_SQRT2 = 1.0 / sqrt(2.0)


def _ffn_kernel(x_ref, w1_ref, b1_ref, w2_ref, b2_ref, o_ref, acc_ref):
    # x_ref : (TM, H)   w1_ref: (H, TI)   b1_ref: (1, TI)
    # w2_ref: (TI, H)   b2_ref: (1, H)    o_ref : (TM, H)
    # acc_ref: (TM, H) float32 accumulator, live across the reduction axis.
    k = pl.program_id(1)

    @pl.when(k == 0)
    def _init():
        # Fold linear_2's bias into the accumulator init (added exactly once).
        acc_ref[...] = jnp.broadcast_to(
            b2_ref[...].astype(jnp.float32), acc_ref.shape)

    # linear_1 on this (TM, TI) slab -- MXU, f32 accumulation.
    h = jnp.dot(x_ref[...], w1_ref[...], preferred_element_type=jnp.float32)
    h = h + b1_ref[...].astype(jnp.float32)

    # exact GELU (PyTorch nn.GELU default, approximate='none'), kept in f32:
    # 0.5 * x * (1 + erf(x / sqrt(2)))
    h = 0.5 * h * (1.0 + lax.erf(h * _INV_SQRT2))

    # linear_2 slice: (TM, TI) @ (TI, H), accumulated in f32.
    acc_ref[...] += jnp.dot(h.astype(w2_ref.dtype), w2_ref[...],
                            preferred_element_type=jnp.float32)

    @pl.when(k == pl.num_programs(1) - 1)
    def _finalize():
        # Dropout(p=0.5) is identity in eval/inference mode.
        # TODO(synk): training-mode dropout would use pltpu.prng_seed +
        #             pltpu.prng_random_bits to build the keep-mask in-kernel.
        o_ref[...] = acc_ref[...].astype(o_ref.dtype)


def _pick_tile_i(I, block_i):
    """Largest TI <= block_i that divides I and is a multiple of 128 (lane dim)."""
    if I <= block_i or I % 128 != 0:
        return I
    ti = (min(block_i, I) // 128) * 128
    while ti > 128 and I % ti != 0:
        ti -= 128
    return ti if I % ti == 0 else I


@functools.partial(jax.jit,
                   static_argnames=("block_m", "block_i", "matmul_dtype"))
def feed_forward(x, w1, b1, w2, b2, *, block_m=256, block_i=2048,
                 matmul_dtype=None):
    """x: (B, S, H). Weights stored as (in_features, out_features).

    matmul_dtype: if set (e.g. jnp.bfloat16), x/w1/w2 are cast so both matmuls
    run on the MXU with narrow operands; accumulation, bias adds and GELU stay
    in float32. Output dtype matches the input x dtype.
    """
    B, S, H = x.shape
    I = w1.shape[1]
    M = B * S
    out_dtype = x.dtype

    if matmul_dtype is not None:
        x = x.astype(matmul_dtype)
        w1 = w1.astype(matmul_dtype)
        w2 = w2.astype(matmul_dtype)
    b1 = b1.reshape(1, I).astype(jnp.float32)
    b2 = b2.reshape(1, H).astype(jnp.float32)

    x2d = x.reshape(M, H)
    in_itemsize = jnp.dtype(x2d.dtype).itemsize
    out_itemsize = jnp.dtype(out_dtype).itemsize

    # --- tile sizes ---------------------------------------------------------
    sub = 8 if in_itemsize >= 4 else 16          # sublane granularity
    tm = max(sub, (min(block_m, M) // sub) * sub)
    m_pad = pl.cdiv(M, tm) * tm
    if m_pad != M:
        x2d = jnp.pad(x2d, ((0, m_pad - M), (0, 0)))
    ti = _pick_tile_i(I, block_i)
    grid = (m_pad // tm, I // ti)                # reduction axis last

    # --- rough VMEM budget + advisory cost estimate --------------------------
    est_vmem = (2 * tm * H * in_itemsize              # x tiles, double-buffered
                + 2 * (H * ti + ti * H) * in_itemsize  # w1/w2 slices
                + 2 * (ti + H) * 4                     # bias slices
                + 2 * tm * H * out_itemsize            # output tiles
                + tm * H * 4)                          # f32 accumulator
    # stay comfortably under v7x's 64 MiB physical VMEM (fine on v5e/v6e too)
    vmem_limit = int(min(max(2 * est_vmem, 8 * 2**20), 48 * 2**20))

    cost = pl.CostEstimate(
        flops=4 * M * H * I,                     # two matmuls, 2*M*H*I each
        transcendentals=M * I,                   # erf per intermediate element
        bytes_accessed=(x2d.size * in_itemsize + w1.size * in_itemsize
                        + w2.size * in_itemsize + b1.size * 4 + b2.size * 4
                        + m_pad * H * out_itemsize))

    out = pl.pallas_call(
        _ffn_kernel,
        out_shape=jax.ShapeDtypeStruct((m_pad, H), out_dtype),
        grid_spec=pltpu.PrefetchScalarGridSpec(
            num_scalar_prefetch=0,
            grid=grid,
            in_specs=[
                pl.BlockSpec((tm, H), lambda i, k: (i, 0)),   # x row tile
                pl.BlockSpec((H, ti), lambda i, k: (0, k)),   # w1 slice
                pl.BlockSpec((1, ti), lambda i, k: (0, k)),   # b1 slice
                pl.BlockSpec((ti, H), lambda i, k: (k, 0)),   # w2 slice
                pl.BlockSpec((1, H), lambda i, k: (0, 0)),    # b2
            ],
            out_specs=pl.BlockSpec((tm, H), lambda i, k: (i, 0)),
            scratch_shapes=[pltpu.VMEM((tm, H), jnp.float32)],
        ),
        compiler_params=pltpu.CompilerParams(
            dimension_semantics=("parallel", "arbitrary"),
            vmem_limit_bytes=vmem_limit,
        ),
        cost_estimate=cost,
    )(x2d, w1, b1, w2, b2)

    return out[:M].reshape(B, S, H)


def _init_params(key, hidden_size, intermediate_size):
    """Deterministic init mimicking nn.Linear's uniform(-1/sqrt(fan_in), ...)."""
    k1, k2, k3, k4 = jax.random.split(key, 4)
    bound1 = 1.0 / sqrt(hidden_size)
    bound2 = 1.0 / sqrt(intermediate_size)
    # stored as (in_features, out_features) — transposed vs PyTorch's layout
    w1 = jax.random.uniform(k1, (hidden_size, intermediate_size),
                            jnp.float32, -bound1, bound1)
    b1 = jax.random.uniform(k2, (1, intermediate_size), jnp.float32,
                            -bound1, bound1)
    w2 = jax.random.uniform(k3, (intermediate_size, hidden_size),
                            jnp.float32, -bound2, bound2)
    b2 = jax.random.uniform(k4, (1, hidden_size), jnp.float32, -bound2, bound2)
    return w1, b1, w2, b2


if __name__ == "__main__":
    # Small but lane-friendly shapes: hidden is a multiple of 128 so output
    # stores are lane-dense; block_m/block_i picked so both grid axes take
    # more than one step and the accumulator/reduction path is exercised.
    batch, seq, hidden_size, intermediate_size = 2, 8, 128, 256

    key = jax.random.PRNGKey(0)
    kx, kp = jax.random.split(key)
    x = jax.random.normal(kx, (batch, seq, hidden_size), jnp.float32)
    w1, b1, w2, b2 = _init_params(kp, hidden_size, intermediate_size)

    # plain-JAX reference (dropout in eval mode == identity)
    def ref_ffn(xq, w1q, w2q):
        h = jnp.dot(xq.reshape(-1, hidden_size), w1q,
                    preferred_element_type=jnp.float32) + b1
        h = 0.5 * h * (1.0 + lax.erf(h / jnp.sqrt(2.0)))
        o = jnp.dot(h.astype(w2q.dtype), w2q,
                    preferred_element_type=jnp.float32) + b2
        return o.reshape(batch, seq, hidden_size)

    # f32 path: matches the PyTorch module (eval mode) numerics.
    out_f32 = feed_forward(x, w1, b1, w2, b2, block_m=8, block_i=128)
    jax.block_until_ready(out_f32)
    ref_f32 = ref_ffn(x, w1, w2)
    assert jnp.allclose(out_f32, ref_f32, atol=1e-4, rtol=1e-4), "f32 mismatch"

    # bf16-MXU path: same structure, bf16 matmul operands, f32 accumulation.
    out_bf16 = feed_forward(x, w1, b1, w2, b2, block_m=8, block_i=128,
                            matmul_dtype=jnp.bfloat16)
    jax.block_until_ready(out_bf16)
    ref_bf16 = ref_ffn(x.astype(jnp.bfloat16), w1.astype(jnp.bfloat16),
                       w2.astype(jnp.bfloat16))
    assert jnp.allclose(out_bf16, ref_bf16.astype(out_bf16.dtype),
                        atol=2e-2, rtol=2e-2), "bf16 mismatch"

    print("KERNEL_OK")
</pallas_src>

<mosaic_0001>
module attributes {stable_mosaic.version = 11 : i64} {
  func.func @_ffn_kernel(%arg0: i32, %arg1: i32, %arg2: memref<8x128xf32, #tpu.memory_space<vmem>>, %arg3: memref<128x128xf32, #tpu.memory_space<vmem>>, %arg4: memref<1x128xf32, #tpu.memory_space<vmem>>, %arg5: memref<128x128xf32, #tpu.memory_space<vmem>>, %arg6: memref<1x128xf32, #tpu.memory_space<vmem>>, %arg7: memref<8x128xf32, #tpu.memory_space<vmem>>, %arg8: memref<8x128xf32, #tpu.memory_space<vmem>>) attributes {dimension_semantics = [#tpu.dimension_semantics<parallel>, #tpu.dimension_semantics<arbitrary>], iteration_bounds = array<i64: 2, 2>, scalar_prefetch = 0 : i64, scratch_operands = 1 : i64, tpu.core_type = #tpu.core_type<tc>, window_params = [{transform_indices = @transform_0, window_bounds = array<i64: 8, 128>}, {transform_indices = @transform_1, window_bounds = array<i64: 128, 128>}, {transform_indices = @transform_2, window_bounds = array<i64: 1, 128>}, {transform_indices = @transform_3, window_bounds = array<i64: 128, 128>}, {pipeline_mode = #tpu.pipeline_mode<synchronous>, transform_indices = @transform_4, window_bounds = array<i64: 1, 128>}, {transform_indices = @transform_5, window_bounds = array<i64: 8, 128>}]} {
    %c0_i32 = arith.constant 0 : i32
    %0 = arith.cmpi eq, %arg1, %c0_i32 : i32
    %1 = arith.extui %0 : i1 to i32
    %c0_i32_0 = arith.constant 0 : i32
    %2 = arith.cmpi ne, %1, %c0_i32_0 : i32
    scf.if %2 {
      %c0_17 = arith.constant 0 : index
      %c0_18 = arith.constant 0 : index
      %25 = vector.load %arg6[%c0_17, %c0_18] : memref<1x128xf32, #tpu.memory_space<vmem>>, vector<1x128xf32>
      %26 = vector.shape_cast %25 : vector<1x128xf32> to vector<1x128xf32>
      %27 = vector.broadcast %26 : vector<1x128xf32> to vector<8x128xf32>
      %c0_19 = arith.constant 0 : index
      %c0_20 = arith.constant 0 : index
      %28 = vector.load %arg8[%c0_19, %c0_20] : memref<8x128xf32, #tpu.memory_space<vmem>>, vector<8x128xf32>
      tpu.vector_store %arg8[%c0_19, %c0_20], %27 {strides = array<i32>} : memref<8x128xf32, #tpu.memory_space<vmem>>, vector<8x128xf32>,
    } else {
    }
    %c0 = arith.constant 0 : index
    %c0_1 = arith.constant 0 : index
    %3 = vector.load %arg2[%c0, %c0_1] : memref<8x128xf32, #tpu.memory_space<vmem>>, vector<8x128xf32>
    %c0_2 = arith.constant 0 : index
    %c0_3 = arith.constant 0 : index
    %4 = vector.load %arg3[%c0_2, %c0_3] : memref<128x128xf32, #tpu.memory_space<vmem>>, vector<128x128xf32>
    %cst = arith.constant dense<0.000000e+00> : vector<8x128xf32>
    %5 = tpu.matmul %3, %4, %cst {dimension_numbers = #tpu.dot_dimension_numbers<[1], [0], [0], [1], [0, 0, 1, 1], [], []>} : vector<8x128xf32>, vector<128x128xf32>, vector<8x128xf32> -> vector<8x128xf32>
    %c0_4 = arith.constant 0 : index
    %c0_5 = arith.constant 0 : index
    %6 = vector.load %arg4[%c0_4, %c0_5] : memref<1x128xf32, #tpu.memory_space<vmem>>, vector<1x128xf32>
    %7 = vector.broadcast %6 : vector<1x128xf32> to vector<8x128xf32>
    %8 = arith.addf %5, %7 : vector<8x128xf32>
    %cst_6 = arith.constant 5.000000e-01 : f32
    %9 = vector.broadcast %cst_6 : f32 to vector<8x128xf32>
    %10 = arith.mulf %9, %8 : vector<8x128xf32>
    %cst_7 = arith.constant 0.707106769 : f32
    %11 = vector.broadcast %cst_7 : f32 to vector<8x128xf32>
    %12 = arith.mulf %8, %11 : vector<8x128xf32>
    %13 = math.erf %12 : vector<8x128xf32>
    %cst_8 = arith.constant 1.000000e+00 : f32
    %14 = vector.broadcast %cst_8 : f32 to vector<8x128xf32>
    %15 = arith.addf %14, %13 : vector<8x128xf32>
    %16 = arith.mulf %10, %15 : vector<8x128xf32>
    %c0_9 = arith.constant 0 : index
    %c0_10 = arith.constant 0 : index
    %17 = vector.load %arg8[%c0_9, %c0_10] : memref<8x128xf32, #tpu.memory_space<vmem>>, vector<8x128xf32>
    %c0_11 = arith.constant 0 : index
    %c0_12 = arith.constant 0 : index
    %18 = vector.load %arg5[%c0_11, %c0_12] : memref<128x128xf32, #tpu.memory_space<vmem>>, vector<128x128xf32>
    %cst_13 = arith.constant dense<0.000000e+00> : vector<8x128xf32>
    %19 = tpu.matmul %16, %18, %cst_13 {dimension_numbers = #tpu.dot_dimension_numbers<[1], [0], [0], [1], [0, 0, 1, 1], [], []>} : vector<8x128xf32>, vector<128x128xf32>, vector<8x128xf32> -> vector<8x128xf32>
    %20 = arith.addf %17, %19 : vector<8x128xf32>
    %c0_14 = arith.constant 0 : index
    %c0_15 = arith.constant 0 : index
    %21 = vector.load %arg8[%c0_14, %c0_15] : memref<8x128xf32, #tpu.memory_space<vmem>>, vector<8x128xf32>
    tpu.vector_store %arg8[%c0_14, %c0_15], %20 {strides = array<i32>} : memref<8x128xf32, #tpu.memory_space<vmem>>, vector<8x128xf32>,
    %c1_i32 = arith.constant 1 : i32
    %22 = arith.cmpi eq, %arg1, %c1_i32 : i32
    %23 = arith.extui %22 : i1 to i32
    %c0_i32_16 = arith.constant 0 : i32
    %24 = arith.cmpi ne, %23, %c0_i32_16 : i32
    scf.if %24 {
      %c0_17 = arith.constant 0 : index
      %c0_18 = arith.constant 0 : index
      %25 = vector.load %arg8[%c0_17, %c0_18] : memref<8x128xf32, #tpu.memory_space<vmem>>, vector<8x128xf32>
      %c0_19 = arith.constant 0 : index
      %c0_20 = arith.constant 0 : index
      %26 = vector.load %arg7[%c0_19, %c0_20] : memref<8x128xf32, #tpu.memory_space<vmem>>, vector<8x128xf32>
      tpu.vector_store %arg7[%c0_19, %c0_20], %25 {strides = array<i32>} : memref<8x128xf32, #tpu.memory_space<vmem>>, vector<8x128xf32>,
    } else {
    }
    return
  }
  func.func @transform_0(%arg0: i32, %arg1: i32) -> (i32, i32) {
    %c0_i32 = arith.constant 0 : i32
    %c0_i32_0 = arith.constant 0 : i32
    return %arg0, %c0_i32 : i32, i32
  }
  func.func @transform_1(%arg0: i32, %arg1: i32) -> (i32, i32) {
    %c0_i32 = arith.constant 0 : i32
    %c0_i32_0 = arith.constant 0 : i32
    return %c0_i32, %arg1 : i32, i32
  }
  func.func @transform_2(%arg0: i32, %arg1: i32) -> (i32, i32) {
    %c0_i32 = arith.constant 0 : i32
    %c0_i32_0 = arith.constant 0 : i32
    return %c0_i32, %arg1 : i32, i32
  }
  func.func @transform_3(%arg0: i32, %arg1: i32) -> (i32, i32) {
    %c0_i32 = arith.constant 0 : i32
    %c0_i32_0 = arith.constant 0 : i32
    return %arg1, %c0_i32 : i32, i32
  }
  func.func @transform_4(%arg0: i32, %arg1: i32) -> (i32, i32) {
    %c0_i32 = arith.constant 0 : i32
    %c0_i32_0 = arith.constant 0 : i32
    %c0_i32_1 = arith.constant 0 : i32
    return %c0_i32, %c0_i32_0 : i32, i32
  }
  func.func @transform_5(%arg0: i32, %arg1: i32) -> (i32, i32) {
    %c0_i32 = arith.constant 0 : i32
    %c0_i32_0 = arith.constant 0 : i32
    return %arg0, %c0_i32 : i32, i32
  }
}

</mosaic_0001>

<llo_original>
// kernel: feed_forward.1
$region0: #{feed_forward.1}
  #allocation0 [shape = 'u32[]', space=smem, size = 0x4, offset = 0x4, fixed_abs, tag = 'smem constant byte address 0x4 - core index']
  #allocation1 [shape = 'u32[144,128]{1,0:T(1,128)}', space=vmem, size = 0x12000, scoped, tag = 'internal scratch']
  #allocation2 [shape = 'f32[8,128]{1,0:T(8,128)}', space=vmem, size = 0x1000, scoped, tag = 'scratch operand']
  %s0 = inlined_call_operand.hbm [shape: f32[16,128], index: 0, kind: input, shape index: {}]
  %s1 = inlined_call_operand.hbm [shape: f32[128,256], index: 1, kind: input, shape index: {}]
  %s2 = inlined_call_operand.vmem [shape: f32[1,256], index: 2, kind: input, shape index: {}]
  %s3 = inlined_call_operand.hbm [shape: f32[256,128], index: 3, kind: input, shape index: {}]
  %s4 = inlined_call_operand.vmem [shape: f32[1,128], index: 4, kind: input, shape index: {}]
  %s5 = inlined_call_operand.hbm [shape: f32[16,128], index: 5, kind: output, shape index: {}]
  %s6 = sld [smem:[#allocation0]]
  $region73: #{feed_forward.1} parent=0
    _
  %s8 = ssub.s32 1, %s6
  %s9 = scalar_select 0, %s8, %s6
  $region1: #{feed_forward.1} parent=0
    #allocation3 [shape = 'u8[8192]{0}', space=vmem, size = 0x2000, scoped, tag = 'input window, operand 0']
    #allocation4 [shape = 's32[2]{0}', space=sflag, size = 0x8, scoped, tag = 'scoped memory for feed_forward.1']
    #allocation5 [shape = 's32[2]{0}', space=sflag, size = 0x8, scoped, tag = 'scoped memory for feed_forward.1']
    #allocation6 [shape = 'u8[131072]{0}', space=vmem, size = 0x20000, scoped, tag = 'input window, operand 1']
    #allocation7 [shape = 's32[2]{0}', space=sflag, size = 0x8, scoped, tag = 'scoped memory for feed_forward.1']
    #allocation8 [shape = 'u8[131072]{0}', space=vmem, size = 0x20000, scoped, tag = 'input window, operand 3']
    #allocation9 [shape = 'u8[8192]{0}', space=vmem, size = 0x2000, scoped, tag = 'output window, operand 0']
    %10 = vsyncpa [#allocation4], 0
    %s11 = scalar_lea.sflag [#allocation4], 1
    %12 = vsyncpa %s11, 0
    %13 = vsyncpa [#allocation7], 0
    %s14 = scalar_lea.sflag [#allocation7], 1
    %15 = vsyncpa %s14, 0
    %16 = vsyncpa [#allocation5], 0
    %s17 = scalar_lea.sflag [#allocation5], 1
    %18 = vsyncpa %s17, 0
    loop: start=0, step=1, limit=6
    $region2: #{feed_forward.1} parent=1 // loop_pre_header
      _
    $region3: #{feed_forward.1} parent=1 // loop_header
      %s20 = sphi 0, %s24
      %p21 = scmp.ge.s32.totalorder %s20, 6
      %s27 = sphi 0, %s39
      %s28 = sphi 0, %s35
      %s29 = sphi 0, %s27
      %s30 = sphi 0, %s28
      %s31 = sphi 0, %s29
      %s32 = sphi 0, %s30
      %s42 = sphi 0, %s44
      %s45 = sphi 0, %s42
      %s46 = sphi 0, %s45
      %s62 = sphi 0, %s46
      %s68 = sphi 0, %s70
      %s71 = sphi 0, %s68
      %s72 = sphi 0, %s71
      %s88 = sphi 0, %s72
      %s94 = sphi 0, %s96
      %s97 = sphi 0, %s94
      %s98 = sphi 0, %s97
      %s114 = sphi 0, %s98
      %s120 = sphi 0, %s122
      %s123 = sphi 0, %s120
      %s124 = sphi 0, %s123
      %s140 = sphi 0, %s124
      %s144 = sphi 0, %s144
      %s146 = sphi 0, %s144
      %s147 = sphi 0, %s146
      %s161 = sphi 0, %s147
      %s167 = sphi 0, %s169
      %s170 = sphi 0, %s167
      %s171 = sphi 0, %s170
      %s187 = sphi 0, %s171
    $region4: #{feed_forward.1} parent=1 // loop_header_branch
      %23 = sbr.rel (%p21) target = $region8
    $region5: #{feed_forward.1} parent=1 // loop_body
      %s25 = ssub.s32 %s20, 1
      %s26 = ssub.s32 %s20, 2
      %s33 = sadd.s32 1, %s28
      %p34 = scmp.ge.s32.totalorder %s33, 2
      %s35 = scalar_select %p34, 0, %s33
      %s36 = sadd.s32 1, %s27
      %s37 = scalar_select %p34, %s36, %s27
      %p38 = scmp.ge.s32.totalorder %s37, 2
      %s39 = scalar_select %p38, 0, %s37
      %s40 = ssub.s32 %s27, %s39
      %p41 = scmp.eq.s32.totalorder %s40, 0
      %s43 = sadd.s32 %s42, 1
      %s44 = scalar_select %p41, %s42, %s43
      %p47 = pneg %p41
      %p48 = scmp.eq.s32.totalorder %s20, 3
      %p49 = por %p47, %p48
      %p50 = scmp.ne.s32.totalorder %s42, %s45
      %p51 = scmp.eq.s32.totalorder %s20, 0
      %p52 = por %p50, %p51
      %p53 = scmp.ne.s32.totalorder %s42, %s45
      %p54 = scmp.eq.s32.totalorder %s25, 3
      %p55 = por %p53, %p54
      %p56 = scmp.ne.s32.totalorder %s45, %s46
      %p57 = scmp.eq.s32.totalorder %s25, 0
      %p58 = por %p56, %p57
      %p59 = scmp.ne.s32.totalorder %s45, %s46
      %p60 = scmp.eq.s32.totalorder %s26, 3
      %p61 = por %p59, %p60
      %p63 = scmp.ne.s32.totalorder %s46, %s62
      %p64 = scmp.eq.s32.totalorder %s26, 0
      %p65 = por %p63, %p64
      %s66 = ssub.s32 %s28, %s35
      %p67 = scmp.eq.s32.totalorder %s66, 0
      %s69 = sadd.s32 %s68, 1
      %s70 = scalar_select %p67, %s68, %s69
      %p73 = pneg %p67
      %p74 = scmp.eq.s32.totalorder %s20, 3
      %p75 = por %p73, %p74
      %p76 = scmp.ne.s32.totalorder %s68, %s71
      %p77 = scmp.eq.s32.totalorder %s20, 0
      %p78 = por %p76, %p77
      %p79 = scmp.ne.s32.totalorder %s68, %s71
      %p80 = scmp.eq.s32.totalorder %s25, 3
      %p81 = por %p79, %p80
      %p82 = scmp.ne.s32.totalorder %s71, %s72
      %p83 = scmp.eq.s32.totalorder %s25, 0
      %p84 = por %p82, %p83
      %p85 = scmp.ne.s32.totalorder %s71, %s72
      %p86 = scmp.eq.s32.totalorder %s26, 3
      %p87 = por %p85, %p86
      %p89 = scmp.ne.s32.totalorder %s72, %s88
      %p90 = scmp.eq.s32.totalorder %s26, 0
      %p91 = por %p89, %p90
      %s92 = ssub.s32 %s28, %s35
      %p93 = scmp.eq.s32.totalorder %s92, 0
      %s95 = sadd.s32 %s94, 1
      %s96 = scalar_select %p93, %s94, %s95
      %p99 = pneg %p93
      %p100 = scmp.eq.s32.totalorder %s20, 3
      %p101 = por %p99, %p100
      %p102 = scmp.ne.s32.totalorder %s94, %s97
      %p103 = scmp.eq.s32.totalorder %s20, 0
      %p104 = por %p102, %p103
      %p105 = scmp.ne.s32.totalorder %s94, %s97
      %p106 = scmp.eq.s32.totalorder %s25, 3
      %p107 = por %p105, %p106
      %p108 = scmp.ne.s32.totalorder %s97, %s98
      %p109 = scmp.eq.s32.totalorder %s25, 0
      %p110 = por %p108, %p109
      %p111 = scmp.ne.s32.totalorder %s97, %s98
      %p112 = scmp.eq.s32.totalorder %s26, 3
      %p113 = por %p111, %p112
      %p115 = scmp.ne.s32.totalorder %s98, %s114
      %p116 = scmp.eq.s32.totalorder %s26, 0
      %p117 = por %p115, %p116
      %s118 = ssub.s32 %s28, %s35
      %p119 = scmp.eq.s32.totalorder %s118, 0
      %s121 = sadd.s32 %s120, 1
      %s122 = scalar_select %p119, %s120, %s121
      %p125 = pneg %p119
      %p126 = scmp.eq.s32.totalorder %s20, 3
      %p127 = por %p125, %p126
      %p128 = scmp.ne.s32.totalorder %s120, %s123
      %p129 = scmp.eq.s32.totalorder %s20, 0
      %p130 = por %p128, %p129
      %p131 = scmp.ne.s32.totalorder %s120, %s123
      %p132 = scmp.eq.s32.totalorder %s25, 3
      %p133 = por %p131, %p132
      %p134 = scmp.ne.s32.totalorder %s123, %s124
      %p135 = scmp.eq.s32.totalorder %s25, 0
      %p136 = por %p134, %p135
      %p137 = scmp.ne.s32.totalorder %s123, %s124
      %p138 = scmp.eq.s32.totalorder %s26, 3
      %p139 = por %p137, %p138
      %p141 = scmp.ne.s32.totalorder %s124, %s140
      %p142 = scmp.eq.s32.totalorder %s26, 0
      %p143 = por %p141, %p142
      %s145 = sadd.s32 %s144, 1
      %p148 = scmp.eq.s32.totalorder %s20, 3
      %p149 = scmp.ne.s32.totalorder %s144, %s146
      %p150 = scmp.eq.s32.totalorder %s20, 0
      %p151 = por %p149, %p150
      %p152 = scmp.ne.s32.totalorder %s144, %s146
      %p153 = scmp.eq.s32.totalorder %s25, 3
      %p154 = por %p152, %p153
      %p155 = scmp.ne.s32.totalorder %s146, %s147
      %p156 = scmp.eq.s32.totalorder %s25, 0
      %p157 = por %p155, %p156
      %p158 = scmp.ne.s32.totalorder %s146, %s147
      %p159 = scmp.eq.s32.totalorder %s26, 3
      %p160 = por %p158, %p159
      %p162 = scmp.ne.s32.totalorder %s147, %s161
      %p163 = scmp.eq.s32.totalorder %s26, 0
      %p164 = por %p162, %p163
      %s165 = ssub.s32 %s27, %s39
      %p166 = scmp.eq.s32.totalorder %s165, 0
      %s168 = sadd.s32 %s167, 1
      %s169 = scalar_select %p166, %s167, %s168
      %p172 = pneg %p166
      %p173 = scmp.eq.s32.totalorder %s20, 3
      %p174 = por %p172, %p173
      %p175 = scmp.ne.s32.totalorder %s167, %s170
      %p176 = scmp.eq.s32.totalorder %s20, 0
      %p177 = por %p175, %p176
      %p178 = scmp.ne.s32.totalorder %s167, %s170
      %p179 = scmp.eq.s32.totalorder %s25, 3
      %p180 = por %p178, %p179
      %p181 = scmp.ne.s32.totalorder %s170, %s171
      %p182 = scmp.eq.s32.totalorder %s25, 0
      %p183 = por %p181, %p182
      %p184 = scmp.ne.s32.totalorder %s170, %s171
      %p185 = scmp.eq.s32.totalorder %s26, 3
      %p186 = por %p184, %p185
      %p188 = scmp.ne.s32.totalorder %s171, %s187
      %p189 = scmp.eq.s32.totalorder %s26, 0
      %p190 = por %p188, %p189
      %p191 = scmp.le.s32.totalorder 1, %s20
      %p192 = scmp.lt.s32.totalorder %s20, 5
      %p193 = pnand %p191, %p192
      %p194 = pneg %p193
      // Predicated region
      $region9: #{feed_forward.1} parent=5 // pred_check
        _
      $region10: #{feed_forward.1} parent=5 // pred_check_branch
        %196 = sbr.rel (%p193) target = $region12
      $region11: #{feed_forward.1} parent=5 // pred_region
        %s197 = ssub.s32 %s20, 1
        // Predicated region
        $region13: #{feed_forward.1} parent=11 // pred_check
          %p198 = pneg %p157
        $region14: #{feed_forward.1} parent=11 // pred_check_branch
          %200 = sbr.rel (%p198) target = $region16
        $region15: #{feed_forward.1} parent=11 // pred_region
          _
        $region16: #{feed_forward.1} parent=11 // pred_fallthru
          _
      $region12: #{feed_forward.1} parent=5 // pred_fallthru
        _
      %p201 = scmp.lt.s32.totalorder %s20, 4
      // Predicated region
      $region17: #{feed_forward.1} parent=5 // pred_check
        %p202 = pneg %p201
      $region18: #{feed_forward.1} parent=5 // pred_check_branch
        %204 = sbr.rel (%p202) target = $region20
      $region19: #{feed_forward.1} parent=5 // pred_region
        // Predicated region
        $region21: #{feed_forward.1} parent=19 // pred_check
          %p205 = pneg %p52
        $region22: #{feed_forward.1} parent=19 // pred_check_branch
          %207 = sbr.rel (%p205) target = $region24
        $region23: #{feed_forward.1} parent=19 // pred_region
          %s208 = sand.u32 %s42, 1
          %s209 = scalar_lea.sflag [#allocation4], %s208
          %s210 = sand.u32 %s42, 1
          %s211 = smul.addr %s210, 8
          %s212 = scalar_lea.vmem [#allocation3], %s211
          %s214 = ssub.s32 128, 128
          %215 = vsyncadd %s209, %s214
          %s216 = smul.addr %s27, 128
          %s217 = scalar_lea.hbm %s0, %s216
          %s219 = sshll.u32 %s212, 4
          %s220 = int_to_ptr.vmem [resolvable:$true] %s219
          %222 = dma.hbm_to_vmem [thread:$0]  %s217, 128, %s220, %s209
        $region24: #{feed_forward.1} parent=19 // pred_fallthru
          _
        // Predicated region
        $region25: #{feed_forward.1} parent=19 // pred_check
          %p223 = pneg %p78
        $region26: #{feed_forward.1} parent=19 // pred_check_branch
          %225 = sbr.rel (%p223) target = $region28
        $region27: #{feed_forward.1} parent=19 // pred_region
          %s226 = sand.u32 %s20, 1
          %s227 = scalar_lea.sflag [#allocation7], %s226
          %s228 = sand.u32 %s68, 1
          %s229 = smul.addr %s228, 128
          %s230 = scalar_lea.vmem [#allocation6], %s229
          %s232 = ssub.s32 2048, 2048
          %233 = vsyncadd %s227, %s232
          %s234 = smul.addr %s28, 128
          %s235 = scalar_lea.hbm %s1, %s234
          %s236 = sshll.u32 %s230, 4
          %s237 = int_to_ptr.vmem [resolvable:$true] %s236
          %242 = dma.hbm_to_vmem [thread:$0]  %s235, 2048, %s237, %s227, 256, 128, 8
        $region28: #{feed_forward.1} parent=19 // pred_fallthru
          _
        // Predicated region
        $region29: #{feed_forward.1} parent=19 // pred_check
          %p243 = pneg %p104
        $region30: #{feed_forward.1} parent=19 // pred_check_branch
          %245 = sbr.rel (%p243) target = $region32
        $region31: #{feed_forward.1} parent=19 // pred_region
          %p246 = scmp.lt.s32.totalorder %s28, 1
          %s247 = scalar_select %p246, %s28, 1
          %s248 = scalar_lea.vmem %s2, %s247
        $region32: #{feed_forward.1} parent=19 // pred_fallthru
          _
        // Predicated region
        $region33: #{feed_forward.1} parent=19 // pred_check
          %p249 = pneg %p130
        $region34: #{feed_forward.1} parent=19 // pred_check_branch
          %251 = sbr.rel (%p249) target = $region36
        $region35: #{feed_forward.1} parent=19 // pred_region
          %s252 = sand.u32 %s20, 1
          %s253 = scalar_lea.sflag [#allocation7], %s252
          %s254 = sand.u32 %s120, 1
          %s255 = smul.addr %s254, 128
          %s256 = scalar_lea.vmem [#allocation8], %s255
          %s257 = smul.u32 16, %s28
          %s259 = ssub.s32 2048, 2048
          %260 = vsyncadd %s253, %s259
          %s261 = smul.addr %s257, 128
          %s262 = scalar_lea.hbm %s3, %s261
          %s263 = sshll.u32 %s256, 4
          %s264 = int_to_ptr.vmem [resolvable:$true] %s263
          %269 = dma.hbm_to_vmem [thread:$0]  %s262, 2048, %s264, %s253, 128, 128, 8
        $region36: #{feed_forward.1} parent=19 // pred_fallthru
          _
      $region20: #{feed_forward.1} parent=5 // pred_fallthru
        _
      %p270 = scmp.le.s32.totalorder 1, %s20
      %p271 = scmp.lt.s32.totalorder %s20, 5
      %p272 = pnand %p270, %p271
      %p273 = pneg %p272
      // Predicated region
      $region37: #{feed_forward.1} parent=5 // pred_check
        _
      $region38: #{feed_forward.1} parent=5 // pred_check_branch
        %275 = sbr.rel (%p272) target = $region40
      $region39: #{feed_forward.1} parent=5 // pred_region
        %s276 = ssub.s32 %s20, 1
        %s277 = sand.u32 %s45, 1
        %s278 = scalar_lea.sflag [#allocation4], %s277
        %s279 = sand.u32 %s45, 1
        %s280 = smul.addr %s279, 8
        %s281 = scalar_lea.vmem [#allocation3], %s280
        // Predicated region
        $region41: #{feed_forward.1} parent=39 // pred_check
          %p282 = pneg %p58
        $region42: #{feed_forward.1} parent=39 // pred_check_branch
          %284 = sbr.rel (%p282) target = $region44
        $region43: #{feed_forward.1} parent=39 // pred_region
          %285 = dma.done %s278, 128
        $region44: #{feed_forward.1} parent=39 // pred_fallthru
          _
        %s286 = sand.u32 %s25, 1
        %s287 = scalar_lea.sflag [#allocation7], %s286
        %s288 = sand.u32 %s71, 1
        %s289 = smul.addr %s288, 128
        %s290 = scalar_lea.vmem [#allocation6], %s289
        // Predicated region
        $region45: #{feed_forward.1} parent=39 // pred_check
          %p291 = pneg %p84
        $region46: #{feed_forward.1} parent=39 // pred_check_branch
          %293 = sbr.rel (%p291) target = $region48
        $region47: #{feed_forward.1} parent=39 // pred_region
          %294 = dma.done %s287, 2048
        $region48: #{feed_forward.1} parent=39 // pred_fallthru
          _
        %s295 = sand.u32 %s25, 1
        %s296 = scalar_lea.sflag [#allocation7], %s295
        %s297 = sand.u32 %s123, 1
        %s298 = smul.addr %s297, 128
        %s299 = scalar_lea.vmem [#allocation8], %s298
        // Predicated region
        $region49: #{feed_forward.1} parent=39 // pred_check
          %p300 = pneg %p136
        $region50: #{feed_forward.1} parent=39 // pred_check_branch
          %302 = sbr.rel (%p300) target = $region52
        $region51: #{feed_forward.1} parent=39 // pred_region
          %303 = dma.done %s296, 2048
        $region52: #{feed_forward.1} parent=39 // pred_fallthru
          _
        %s304 = sand.u32 %s45, 1
        %s305 = scalar_lea.sflag [#allocation4], %s304
        %s306 = sand.u32 %s45, 1
        %s307 = smul.addr %s306, 8
        %s308 = scalar_lea.vmem [#allocation3], %s307
        %p309 = pneg %p58
        %p310 = pneg %p55
        %s311 = sand.u32 %s25, 1
        %s312 = scalar_lea.sflag [#allocation7], %s311
        %s313 = sand.u32 %s71, 1
        %s314 = smul.addr %s313, 128
        %s315 = scalar_lea.vmem [#allocation6], %s314
        %p316 = pneg %p84
        %p317 = pneg %p81
        %p318 = scmp.lt.s32.totalorder %s30, 1
        %s319 = scalar_select %p318, %s30, 1
        %s320 = scalar_lea.vmem %s2, %s319
        %p321 = pneg %p110
        %p322 = pneg %p107
        %s323 = sand.u32 %s25, 1
        %s324 = scalar_lea.sflag [#allocation7], %s323
        %s325 = sand.u32 %s123, 1
        %s326 = smul.addr %s325, 128
        %s327 = scalar_lea.vmem [#allocation8], %s326
        %p328 = pneg %p136
        %p329 = pneg %p133
        %p330 = pneg %p157
        %p331 = pneg %p154
        %p332 = pneg %p183
        %p333 = pneg %p180
        %s334 = sand.u32 %s170, 1
        %s335 = scalar_lea.sflag [#allocation5], %s334
        %s336 = sand.u32 %s170, 1
        %s337 = smul.addr %s336, 8
        %s338 = scalar_lea.vmem [#allocation9], %s337
        %p339 = scmp.lt.s32.totalorder %s30, 1
        %s340 = scalar_select %p339, %s30, 1
        %s341 = scalar_lea.vmem %s2, %s340
        %s342 = smul.u32 16, %s30
        %p343 = scmp.eq.s32.totalorder %s30, 0
        // Predicated region
        $region53: #{feed_forward.1} parent=39 // pred_check
          %p344 = pneg %p343
        $region54: #{feed_forward.1} parent=39 // pred_check_branch
          %346 = sbr.rel (%p344) target = $region56
        $region55: #{feed_forward.1} parent=39 // pred_region
          %v347 = vld [vmem:[%s4] sm:$0x1]
          %v349 = vlaneseq
          %v350 = vshrl.u32 %v349, 7
          %v351 = vsub.s32 0, %v350
          %v352 = vrot.slane %v347, %v351
          %354 = vst [vmem:[#allocation2] sm:$0xff] %v352
        $region56: #{feed_forward.1} parent=39 // pred_fallthru
          _
        %v355 = vld [vmem:[%s281] sm:$0xff]
        %v356 = vld [vmem:[%s290] sm:$0xff]
        %v357 = vld [vmem:[%s290 + $0x8] sm:$0xff]
        %v358 = vld [vmem:[%s290 + $0x10] sm:$0xff]
        %v359 = vld [vmem:[%s290 + $0x18] sm:$0xff]
        %v360 = vld [vmem:[%s290 + $0x20] sm:$0xff]
        %v361 = vld [vmem:[%s290 + $0x28] sm:$0xff]
        %v362 = vld [vmem:[%s290 + $0x30] sm:$0xff]
        %v363 = vld [vmem:[%s290 + $0x38] sm:$0xff]
        %v364 = vld [vmem:[%s290 + $0x40] sm:$0xff]
        %v365 = vld [vmem:[%s290 + $0x48] sm:$0xff]
        %v366 = vld [vmem:[%s290 + $0x50] sm:$0xff]
        %v367 = vld [vmem:[%s290 + $0x58] sm:$0xff]
        %v368 = vld [vmem:[%s290 + $0x60] sm:$0xff]
        %v369 = vld [vmem:[%s290 + $0x68] sm:$0xff]
        %v370 = vld [vmem:[%s290 + $0x70] sm:$0xff]
        %v371 = vld [vmem:[%s290 + $0x78] sm:$0xff]
        %v372 = vld [vmem:[%s341] sm:$0x1]
        %v374 = vlaneseq
        %v375 = vshrl.u32 %v374, 7
        %v376 = vsub.s32 0, %v375
        %v377 = vrot.slane %v372, %v376
        %379 = vmatprep.subr.mxu0 0.0
        %380 = vmatpush1.msra.mxu0 %v371
        %381 = vmatprep.subr.mxu0 0.0
        %382 = vmatpush1.msra.mxu0 %v370
        %383 = vmatprep.subr.mxu0 0.0
        %384 = vmatpush1.msra.mxu0 %v369
        %385 = vmatprep.subr.mxu0 0.0
        %386 = vmatpush1.msra.mxu0 %v368
        %387 = vmatprep.subr.mxu0 0.0
        %388 = vmatpush1.msra.mxu0 %v367
        %389 = vmatprep.subr.mxu0 0.0
        %390 = vmatpush1.msra.mxu0 %v366
        %391 = vmatprep.subr.mxu0 0.0
        %392 = vmatpush1.msra.mxu0 %v365
        %393 = vmatprep.subr.mxu0 0.0
        %394 = vmatpush1.msra.mxu0 %v364
        %395 = vmatprep.subr.mxu0 0.0
        %396 = vmatpush1.msra.mxu0 %v363
        %397 = vmatprep.subr.mxu0 0.0
        %398 = vmatpush1.msra.mxu0 %v362
        %399 = vmatprep.subr.mxu0 0.0
        %400 = vmatpush1.msra.mxu0 %v361
        %401 = vmatprep.subr.mxu0 0.0
        %402 = vmatpush1.msra.mxu0 %v360
        %403 = vmatprep.subr.mxu0 0.0
        %404 = vmatpush1.msra.mxu0 %v359
        %405 = vmatprep.subr.mxu0 0.0
        %406 = vmatpush1.msra.mxu0 %v358
        %407 = vmatprep.subr.mxu0 0.0
        %408 = vmatpush1.msra.mxu0 %v357
        %409 = vmatprep.subr.mxu0 0.0
        %410 = vmatpush1.msra.mxu0 %v356
        %411 = vmatprep.subr.mxu0 0.0
        %412 = vmatpush2.msra.mxu0 0.0
        %413 = vmatprep.subr.mxu0 0.0
        %414 = vmatpush2.msra.mxu0 0.0
        %415 = vmatprep.subr.mxu0 0.0
        %416 = vmatpush2.msra.mxu0 0.0
        %417 = vmatprep.subr.mxu0 0.0
        %418 = vmatpush2.msra.mxu0 0.0
        %419 = vmatprep.subr.mxu0 0.0
        %420 = vmatpush2.msra.mxu0 0.0
        %421 = vmatprep.subr.mxu0 0.0
        %422 = vmatpush2.msra.mxu0 0.0
        %423 = vmatprep.subr.mxu0 0.0
        %424 = vmatpush2.msra.mxu0 0.0
        %425 = vmatprep.subr.mxu0 0.0
        %426 = vmatpush2.msra.mxu0 0.0
        %427 = vmatprep.subr.mxu0 0.0
        %428 = vmatpush2.msra.mxu0 0.0
        %429 = vmatprep.subr.mxu0 0.0
        %430 = vmatpush2.msra.mxu0 0.0
        %431 = vmatprep.subr.mxu0 0.0
        %432 = vmatpush2.msra.mxu0 0.0
        %433 = vmatprep.subr.mxu0 0.0
        %434 = vmatpush2.msra.mxu0 0.0
        %435 = vmatprep.subr.mxu0 0.0
        %436 = vmatpush2.msra.mxu0 0.0
        %437 = vmatprep.subr.mxu0 0.0
        %438 = vmatpush2.msra.mxu0 0.0
        %439 = vmatprep.subr.mxu0 0.0
        %440 = vmatpush2.msra.mxu0 0.0
        %441 = vmatprep.subr.mxu0 0.0
        %442 = vmatpush2.msra.mxu0 0.0
        %443 = vmatprep.mubr.f32.mxu0 0.0
        %444 = vmatmul.mubr.f32.gmra.mxu0 %v355
        %v445 = vpop.f32.mrf.mxu0
        %v446 = vadd.f32 %v377, %v445
        %v447 = vpop.f32.mrf.mxu0
        %448 = vdwg.mxu0
        %v449 = vmul.f32 %v446, 0.5
        %v450 = vmul.f32 %v446, 0.70710677
        %v451 = verf.f32.pop %v450
        %v452 = vadd.f32 %v451, 1.0
        %v453 = vmul.f32 %v449, %v452
        %v454 = vld [vmem:[#allocation2] sm:$0xff]
        %v455 = vld [vmem:[%s299] sm:$0xff]
        %v456 = vld [vmem:[%s299 + $0x8] sm:$0xff]
        %v457 = vld [vmem:[%s299 + $0x10] sm:$0xff]
        %v458 = vld [vmem:[%s299 + $0x18] sm:$0xff]
        %v459 = vld [vmem:[%s299 + $0x20] sm:$0xff]
        %v460 = vld [vmem:[%s299 + $0x28] sm:$0xff]
        %v461 = vld [vmem:[%s299 + $0x30] sm:$0xff]
        %v462 = vld [vmem:[%s299 + $0x38] sm:$0xff]
        %v463 = vld [vmem:[%s299 + $0x40] sm:$0xff]
        %v464 = vld [vmem:[%s299 + $0x48] sm:$0xff]
        %v465 = vld [vmem:[%s299 + $0x50] sm:$0xff]
        %v466 = vld [vmem:[%s299 + $0x58] sm:$0xff]
        %v467 = vld [vmem:[%s299 + $0x60] sm:$0xff]
        %v468 = vld [vmem:[%s299 + $0x68] sm:$0xff]
        %v469 = vld [vmem:[%s299 + $0x70] sm:$0xff]
        %v470 = vld [vmem:[%s299 + $0x78] sm:$0xff]
        %471 = vmatprep.subr.mxu0 0.0
        %472 = vmatpush1.msra.mxu0 %v470
        %473 = vmatprep.subr.mxu0 0.0
        %474 = vmatpush1.msra.mxu0 %v469
        %475 = vmatprep.subr.mxu0 0.0
        %476 = vmatpush1.msra.mxu0 %v468
        %477 = vmatprep.subr.mxu0 0.0
        %478 = vmatpush1.msra.mxu0 %v467
        %479 = vmatprep.subr.mxu0 0.0
        %480 = vmatpush1.msra.mxu0 %v466
        %481 = vmatprep.subr.mxu0 0.0
        %482 = vmatpush1.msra.mxu0 %v465
        %483 = vmatprep.subr.mxu0 0.0
        %484 = vmatpush1.msra.mxu0 %v464
        %485 = vmatprep.subr.mxu0 0.0
        %486 = vmatpush1.msra.mxu0 %v463
        %487 = vmatprep.subr.mxu0 0.0
        %488 = vmatpush1.msra.mxu0 %v462
        %489 = vmatprep.subr.mxu0 0.0
        %490 = vmatpush1.msra.mxu0 %v461
        %491 = vmatprep.subr.mxu0 0.0
        %492 = vmatpush1.msra.mxu0 %v460
        %493 = vmatprep.subr.mxu0 0.0
        %494 = vmatpush1.msra.mxu0 %v459
        %495 = vmatprep.subr.mxu0 0.0
        %496 = vmatpush1.msra.mxu0 %v458
        %497 = vmatprep.subr.mxu0 0.0
        %498 = vmatpush1.msra.mxu0 %v457
        %499 = vmatprep.subr.mxu0 0.0
        %500 = vmatpush1.msra.mxu0 %v456
        %501 = vmatprep.subr.mxu0 0.0
        %502 = vmatpush1.msra.mxu0 %v455
        %503 = vmatprep.subr.mxu0 0.0
        %504 = vmatpush2.msra.mxu0 0.0
        %505 = vmatprep.subr.mxu0 0.0
        %506 = vmatpush2.msra.mxu0 0.0
        %507 = vmatprep.subr.mxu0 0.0
        %508 = vmatpush2.msra.mxu0 0.0
        %509 = vmatprep.subr.mxu0 0.0
        %510 = vmatpush2.msra.mxu0 0.0
        %511 = vmatprep.subr.mxu0 0.0
        %512 = vmatpush2.msra.mxu0 0.0
        %513 = vmatprep.subr.mxu0 0.0
        %514 = vmatpush2.msra.mxu0 0.0
        %515 = vmatprep.subr.mxu0 0.0
        %516 = vmatpush2.msra.mxu0 0.0
        %517 = vmatprep.subr.mxu0 0.0
        %518 = vmatpush2.msra.mxu0 0.0
        %519 = vmatprep.subr.mxu0 0.0
        %520 = vmatpush2.msra.mxu0 0.0
        %521 = vmatprep.subr.mxu0 0.0
        %522 = vmatpush2.msra.mxu0 0.0
        %523 = vmatprep.subr.mxu0 0.0
        %524 = vmatpush2.msra.mxu0 0.0
        %525 = vmatprep.subr.mxu0 0.0
        %526 = vmatpush2.msra.mxu0 0.0
        %527 = vmatprep.subr.mxu0 0.0
        %528 = vmatpush2.msra.mxu0 0.0
        %529 = vmatprep.subr.mxu0 0.0
        %530 = vmatpush2.msra.mxu0 0.0
        %531 = vmatprep.subr.mxu0 0.0
        %532 = vmatpush2.msra.mxu0 0.0
        %533 = vmatprep.subr.mxu0 0.0
        %534 = vmatpush2.msra.mxu0 0.0
        %535 = vmatprep.mubr.f32.mxu0 0.0
        %536 = vmatmul.mubr.f32.gmra.mxu0 %v453
        %v537 = vpop.f32.mrf.mxu0
        %v538 = vadd.f32 0.0, %v537
        %v539 = vpop.f32.mrf.mxu0
        %540 = vdwg.mxu0
        %v541 = vadd.f32 %v454, %v538
        %542 = vst [vmem:[#allocation2] sm:$0xff] %v541
        %p543 = scmp.eq.s32.totalorder %s30, 1
        // Predicated region
        $region57: #{feed_forward.1} parent=39 // pred_check
          %p544 = pneg %p543
        $region58: #{feed_forward.1} parent=39 // pred_check_branch
          %546 = sbr.rel (%p544) target = $region60
        $region59: #{feed_forward.1} parent=39 // pred_region
          %v547 = vld [vmem:[#allocation2] sm:$0xff]
          %548 = vst [vmem:[%s338] sm:$0xff] %v547
        $region60: #{feed_forward.1} parent=39 // pred_fallthru
          _
        %s549 = sand.u32 %s170, 1
        %s550 = scalar_lea.sflag [#allocation5], %s549
        %s551 = sand.u32 %s170, 1
        %s552 = smul.addr %s551, 8
        %s553 = scalar_lea.vmem [#allocation9], %s552
        // Predicated region
        $region61: #{feed_forward.1} parent=39 // pred_check
          %p554 = pneg %p180
        $region62: #{feed_forward.1} parent=39 // pred_check_branch
          %556 = sbr.rel (%p554) target = $region64
        $region63: #{feed_forward.1} parent=39 // pred_region
          %s558 = ssub.s32 128, 128
          %559 = vsyncadd %s550, %s558
          %s560 = smul.addr %s29, 128
          %s561 = scalar_lea.hbm %s5, %s560
          %s563 = sshll.u32 %s553, 4
          %s564 = int_to_ptr.vmem [resolvable:$true] %s563
          %566 = dma.vmem_to_hbm [thread:$0]  %s564, 128, %s561, %s550
        $region64: #{feed_forward.1} parent=39 // pred_fallthru
          _
      $region40: #{feed_forward.1} parent=5 // pred_fallthru
        _
      %p567 = scmp.le.s32.totalorder 2, %s20
      // Predicated region
      $region65: #{feed_forward.1} parent=5 // pred_check
        %p568 = pneg %p567
      $region66: #{feed_forward.1} parent=5 // pred_check_branch
        %570 = sbr.rel (%p568) target = $region68
      $region67: #{feed_forward.1} parent=5 // pred_region
        %s571 = ssub.s32 %s20, 2
        // Predicated region
        $region69: #{feed_forward.1} parent=67 // pred_check
          %p572 = pneg %p186
        $region70: #{feed_forward.1} parent=67 // pred_check_branch
          %574 = sbr.rel (%p572) target = $region72
        $region71: #{feed_forward.1} parent=67 // pred_region
          %s575 = sand.u32 %s171, 1
          %s576 = scalar_lea.sflag [#allocation5], %s575
          %s577 = sand.u32 %s171, 1
          %s578 = smul.addr %s577, 8
          %s579 = scalar_lea.vmem [#allocation9], %s578
          %580 = dma.done %s576, 128
        $region72: #{feed_forward.1} parent=67 // pred_fallthru
          _
      $region68: #{feed_forward.1} parent=5 // pred_fallthru
        _
    $region6: #{feed_forward.1} parent=1 // loop_footer
      %s24 = sadd.s32 1, %s20
    $region7: #{feed_forward.1} parent=1 // loop_footer_branch
      %19 = sbr.rel target = $region3
    $region8: #{feed_forward.1} parent=1 // loop_exit
      _
    %581 = vsyncpa [#allocation4], 1
    %s582 = scalar_lea.sflag [#allocation4], 1
    %583 = vsyncpa %s582, 1
    %584 = vsyncpa [#allocation7], 1
    %s585 = scalar_lea.sflag [#allocation7], 1
    %586 = vsyncpa %s585, 1
    %587 = vsyncpa [#allocation5], 1
    %s588 = scalar_lea.sflag [#allocation5], 1
    %589 = vsyncpa %s588, 1

</llo_original>
